<compile_context>
chip_gen: v5e
topology: v5e:2x2
jax: 0.10.0
libtpu: 0.0.40
codegen_flags: <defaults>
</compile_context>

<pallas_src>
import jax
import jax.numpy as jnp
from jax.experimental import pallas as pl
from jax.experimental.pallas import tpu as pltpu

EPS = 1e-8  # torch.nn.CosineSimilarity default eps


# ---------------------------------------------------------------------------
# Kernel
# ---------------------------------------------------------------------------
def _direction_loss_kernel(x_ref, y_ref, o_ref, dot_acc, xx_acc, yy_acc):
    """Grid = (batch tiles, D tiles).  Per-row partial sums accumulate across
    the innermost (reduction) axis in (tb, 1) f32 VMEM scratch."""
    k = pl.program_id(1)

    @pl.when(k == 0)
    def _():
        dot_acc[...] = jnp.zeros_like(dot_acc)
        xx_acc[...] = jnp.zeros_like(xx_acc)
        yy_acc[...] = jnp.zeros_like(yy_acc)

    x = x_ref[...]
    y = y_ref[...]
    # Dtype-gated upcast (no-op for f32 inputs; deliberate for bf16/fp8 paths).
    if x.dtype != jnp.float32:
        x = x.astype(jnp.float32)
    if y.dtype != jnp.float32:
        y = y.astype(jnp.float32)

    dot_acc[...] += jnp.sum(x * y, axis=-1, keepdims=True)
    xx_acc[...] += jnp.sum(x * x, axis=-1, keepdims=True)
    yy_acc[...] += jnp.sum(y * y, axis=-1, keepdims=True)

    @pl.when(k == pl.num_programs(1) - 1)
    def _():
        # Matches torch exactly: cos = dot / max(||x|| * ||y||, eps).
        denom = jnp.maximum(jnp.sqrt(xx_acc[...]) * jnp.sqrt(yy_acc[...]), EPS)
        o_ref[...] = (1.0 - dot_acc[...] / denom).astype(o_ref.dtype)


# ---------------------------------------------------------------------------
# Hardware-aware tiling helpers
# ---------------------------------------------------------------------------
def _cdiv(a: int, b: int) -> int:
    return -(-a // b)


def _vmem_capacity_bytes() -> int:
    """Physical VMEM per TensorCore; conservative fallback = 64 MiB (v7x)."""
    try:
        return int(pltpu.get_tpu_info().vmem_capacity_bytes)
    except Exception:
        return 64 * 1024 * 1024


def _num_tensorcores() -> int:
    """Best-effort TensorCore count per device (2 on v7x, 1 on v5e/v6e)."""
    try:
        info = pltpu.get_tpu_info()
        for attr in ("num_cores", "num_tensorcores", "tensorcores_per_chip",
                     "cores_per_chip"):
            v = getattr(info, attr, None)
            if v:
                return int(v)
    except Exception:
        pass
    try:
        dev = jax.devices()[0]
        for attr in ("num_cores", "core_count"):
            v = getattr(dev, attr, None)
            if v:
                return int(v)
    except Exception:
        pass
    return 1


def _choose_tiles(B: int, D: int, dtype, num_cores: int, tile_budget: int):
    """Pick (tb, tk).

    tile_budget covers 2 inputs x 2 pipeline buffers x (tb*tk*itemsize) plus a
    one-tile f32 temporary allowance (upcast / product).  tb targets >= 512
    rows (large-block HBM-roofline regime); if full-D blocks would force tb
    below that, D is tiled with a 128-multiple divisor instead.
    """
    itemsize = jnp.dtype(dtype).itemsize
    packing = max(8, 32 // itemsize)  # sublane packing: f32->8, bf16->16, i8->32

    def rows_for(width: int) -> int:
        per_row = width * (4 * itemsize + 4)
        return max(1, tile_budget // per_row)

    min_rows, max_rows = 512, 4096

    # Feature-dim tile: keep D whole unless it collapses the batch tile.
    tk = D
    if rows_for(D) < min_rows:
        best = None
        cand = 128
        while cand < D:
            if D % cand == 0 and rows_for(cand) >= min_rows:
                best = cand
            cand += 128
        if best is not None:
            tk = best
        # else: no clean 128-multiple divisor of D -> keep full D (correctness
        # over the last-chunk masking complexity; tb just ends up smaller).

    rows = min(rows_for(tk), max_rows)
    rows = max(packing, (rows // packing) * packing)

    # Batch tile.
    if B <= rows and not (num_cores >= 2 and B >= 2 * packing):
        return B, tk  # single full-batch block (exact dim, no masking needed)

    n_b = _cdiv(B, rows)
    if num_cores >= 2 and B >= num_cores * packing:
        # Even tile count so the "parallel"/CORE_PARALLEL axis splits across TCs.
        n_b = _cdiv(n_b, num_cores) * num_cores
    tb = _cdiv(B, n_b)
    tb = _cdiv(tb, packing) * packing
    if _cdiv(B, tb) == 1:
        tb = B
    return tb, tk


# ---------------------------------------------------------------------------
# Wrapper
# ---------------------------------------------------------------------------
def direction_loss(x: jax.Array, y: jax.Array, *, tb: int | None = None,
                   tk: int | None = None) -> jax.Array:
    """1 - cosine_similarity(x, y, dim=-1), eps=1e-8. x, y: (B, D) -> (B,)."""
    assert x.shape == y.shape and x.ndim == 2
    B, D = x.shape

    num_cores = _num_tensorcores()
    vmem_cap = _vmem_capacity_bytes()
    # Leave compiler headroom: 3/4 of physical, capped at 96 MiB (v5e/v6e have
    # 128 MiB, v7x has 64 MiB), floored at 32 MiB.
    vmem_limit = max(32 * 1024 * 1024, min((vmem_cap * 3) // 4, 96 * 1024 * 1024))
    tile_budget = (vmem_limit * 3) // 4

    auto_tb, auto_tk = _choose_tiles(B, D, x.dtype, num_cores, tile_budget)
    if tb is None:
        tb = auto_tb
    if tk is None:
        tk = auto_tk
    assert tb == B or tb % 8 == 0, "tb must be a multiple of 8 or equal to B"
    assert D % tk == 0 and (tk == D or tk % 128 == 0), "tk must divide D (x128)"

    n_b = _cdiv(B, tb)   # ragged last block handled by Pallas, no input padding
    n_k = D // tk

    batch_sem = pltpu.PARALLEL
    if num_cores >= 2 and n_b >= num_cores and n_b % num_cores == 0:
        # Real multi-TC split on v7x; no-op path never taken on v5e/v6e.
        batch_sem = getattr(pltpu, "CORE_PARALLEL", pltpu.PARALLEL)

    out = pl.pallas_call(
        _direction_loss_kernel,
        out_shape=jax.ShapeDtypeStruct((B, 1), jnp.float32),
        grid_spec=pltpu.PrefetchScalarGridSpec(
            num_scalar_prefetch=0,
            grid=(n_b, n_k),                      # reduction axis innermost
            in_specs=[
                pl.BlockSpec((tb, tk), lambda i, k: (i, k)),
                pl.BlockSpec((tb, tk), lambda i, k: (i, k)),
            ],
            out_specs=pl.BlockSpec((tb, 1), lambda i, k: (i, 0)),
            scratch_shapes=[pltpu.VMEM((tb, 1), jnp.float32)] * 3,
        ),
        compiler_params=pltpu.CompilerParams(
            dimension_semantics=(batch_sem, pltpu.ARBITRARY),
            vmem_limit_bytes=vmem_limit,
        ),
    )(x, y)
    return out[:, 0]  # (B,)


# ---------------------------------------------------------------------------
# Reference + test
# ---------------------------------------------------------------------------
def _reference(x, y):
    x = x.astype(jnp.float32)
    y = y.astype(jnp.float32)
    dot = jnp.sum(x * y, axis=-1)
    denom = jnp.maximum(
        jnp.linalg.norm(x, axis=-1) * jnp.linalg.norm(y, axis=-1), EPS
    )
    return 1.0 - dot / denom


# TODO(synk): CLIP ViT-B/32 loading, image preprocessing and encode_images are
# external-model machinery, not part of forward(); only the cosine loss is
# implemented here.

if __name__ == "__main__":
    # CLIP ViT-B/32 feature dim is 512; small batch for the smoke test.
    B, D = 8, 512
    key = jax.random.PRNGKey(0)
    kx, ky = jax.random.split(key)
    x = jax.random.normal(kx, (B, D), dtype=jnp.float32)
    y = jax.random.normal(ky, (B, D), dtype=jnp.float32)

    out = jax.block_until_ready(direction_loss(x, y))
    ref = _reference(x, y)
    assert out.shape == (B,)
    assert jnp.allclose(out, ref, atol=1e-5, rtol=1e-5), (out, ref)

    # Ragged multi-tile batch (no input padding; OOB rows dropped) + inner
    # D-tiling reduction path, forced via small tiles.
    B2 = 300
    x2 = jax.random.normal(kx, (B2, D), dtype=jnp.float32)
    y2 = jax.random.normal(ky, (B2, D), dtype=jnp.float32)
    out2 = jax.block_until_ready(direction_loss(x2, y2, tb=128, tk=128))
    ref2 = _reference(x2, y2)
    assert out2.shape == (B2,)
    assert jnp.allclose(out2, ref2, atol=1e-5, rtol=1e-5), (out2, ref2)

    # bf16 inputs exercise the in-kernel upcast and 16-row sublane packing.
    out3 = jax.block_until_ready(
        direction_loss(x2.astype(jnp.bfloat16), y2.astype(jnp.bfloat16))
    )
    assert out3.shape == (B2,)
    assert jnp.allclose(out3, ref2, atol=2e-2, rtol=2e-2), (out3, ref2)

    print("KERNEL_OK")
</pallas_src>

<mosaic_0001>
module attributes {stable_mosaic.version = 11 : i64} {
  func.func @_direction_loss_kernel(%arg0: i32, %arg1: i32, %arg2: memref<8x512xf32, #tpu.memory_space<vmem>>, %arg3: memref<8x512xf32, #tpu.memory_space<vmem>>, %arg4: memref<8x1xf32, #tpu.memory_space<vmem>>, %arg5: memref<8x1xf32, #tpu.memory_space<vmem>>, %arg6: memref<8x1xf32, #tpu.memory_space<vmem>>, %arg7: memref<8x1xf32, #tpu.memory_space<vmem>>) attributes {dimension_semantics = [#tpu.dimension_semantics<parallel>, #tpu.dimension_semantics<arbitrary>], iteration_bounds = array<i64: 1, 1>, scalar_prefetch = 0 : i64, scratch_operands = 3 : i64, tpu.core_type = #tpu.core_type<tc>, window_params = [{transform_indices = @transform_0, window_bounds = array<i64: 8, 512>}, {transform_indices = @transform_1, window_bounds = array<i64: 8, 512>}, {transform_indices = @transform_2, window_bounds = array<i64: 8, 1>}]} {
    %c0_i32 = arith.constant 0 : i32
    %0 = arith.cmpi eq, %arg1, %c0_i32 : i32
    %1 = arith.extui %0 : i1 to i32
    %c0_i32_0 = arith.constant 0 : i32
    %2 = arith.cmpi ne, %1, %c0_i32_0 : i32
    scf.if %2 {
      %cst_20 = arith.constant 0.000000e+00 : f32
      %26 = vector.broadcast %cst_20 : f32 to vector<8x1xf32>
      %c0_21 = arith.constant 0 : index
      %c0_22 = arith.constant 0 : index
      %27 = vector.load %arg5[%c0_21, %c0_22] : memref<8x1xf32, #tpu.memory_space<vmem>>, vector<8x1xf32>
      tpu.vector_store %arg5[%c0_21, %c0_22], %26 {strides = array<i32>} : memref<8x1xf32, #tpu.memory_space<vmem>>, vector<8x1xf32>,
      %cst_23 = arith.constant 0.000000e+00 : f32
      %28 = vector.broadcast %cst_23 : f32 to vector<8x1xf32>
      %c0_24 = arith.constant 0 : index
      %c0_25 = arith.constant 0 : index
      %29 = vector.load %arg6[%c0_24, %c0_25] : memref<8x1xf32, #tpu.memory_space<vmem>>, vector<8x1xf32>
      tpu.vector_store %arg6[%c0_24, %c0_25], %28 {strides = array<i32>} : memref<8x1xf32, #tpu.memory_space<vmem>>, vector<8x1xf32>,
      %cst_26 = arith.constant 0.000000e+00 : f32
      %30 = vector.broadcast %cst_26 : f32 to vector<8x1xf32>
      %c0_27 = arith.constant 0 : index
      %c0_28 = arith.constant 0 : index
      %31 = vector.load %arg7[%c0_27, %c0_28] : memref<8x1xf32, #tpu.memory_space<vmem>>, vector<8x1xf32>
      tpu.vector_store %arg7[%c0_27, %c0_28], %30 {strides = array<i32>} : memref<8x1xf32, #tpu.memory_space<vmem>>, vector<8x1xf32>,
    } else {
    }
    %c0 = arith.constant 0 : index
    %c0_1 = arith.constant 0 : index
    %3 = vector.load %arg2[%c0, %c0_1] : memref<8x512xf32, #tpu.memory_space<vmem>>, vector<8x512xf32>
    %c0_2 = arith.constant 0 : index
    %c0_3 = arith.constant 0 : index
    %4 = vector.load %arg3[%c0_2, %c0_3] : memref<8x512xf32, #tpu.memory_space<vmem>>, vector<8x512xf32>
    %c0_4 = arith.constant 0 : index
    %c0_5 = arith.constant 0 : index
    %5 = vector.load %arg5[%c0_4, %c0_5] : memref<8x1xf32, #tpu.memory_space<vmem>>, vector<8x1xf32>
    %6 = arith.mulf %3, %4 : vector<8x512xf32>
    %cst = arith.constant dense<0.000000e+00> : vector<8xf32>
    %7 = vector.multi_reduction <add>, %6, %cst [1] : vector<8x512xf32> to vector<8xf32>
    %8 = vector.shape_cast %7 : vector<8xf32> to vector<8x1xf32>
    %9 = arith.addf %5, %8 : vector<8x1xf32>
    %c0_6 = arith.constant 0 : index
    %c0_7 = arith.constant 0 : index
    %10 = vector.load %arg5[%c0_6, %c0_7] : memref<8x1xf32, #tpu.memory_space<vmem>>, vector<8x1xf32>
    tpu.vector_store %arg5[%c0_6, %c0_7], %9 {strides = array<i32>} : memref<8x1xf32, #tpu.memory_space<vmem>>, vector<8x1xf32>,
    %c0_8 = arith.constant 0 : index
    %c0_9 = arith.constant 0 : index
    %11 = vector.load %arg6[%c0_8, %c0_9] : memref<8x1xf32, #tpu.memory_space<vmem>>, vector<8x1xf32>
    %12 = arith.mulf %3, %3 : vector<8x512xf32>
    %cst_10 = arith.constant dense<0.000000e+00> : vector<8xf32>
    %13 = vector.multi_reduction <add>, %12, %cst_10 [1] : vector<8x512xf32> to vector<8xf32>
    %14 = vector.shape_cast %13 : vector<8xf32> to vector<8x1xf32>
    %15 = arith.addf %11, %14 : vector<8x1xf32>
    %c0_11 = arith.constant 0 : index
    %c0_12 = arith.constant 0 : index
    %16 = vector.load %arg6[%c0_11, %c0_12] : memref<8x1xf32, #tpu.memory_space<vmem>>, vector<8x1xf32>
    tpu.vector_store %arg6[%c0_11, %c0_12], %15 {strides = array<i32>} : memref<8x1xf32, #tpu.memory_space<vmem>>, vector<8x1xf32>,
    %c0_13 = arith.constant 0 : index
    %c0_14 = arith.constant 0 : index
    %17 = vector.load %arg7[%c0_13, %c0_14] : memref<8x1xf32, #tpu.memory_space<vmem>>, vector<8x1xf32>
    %18 = arith.mulf %4, %4 : vector<8x512xf32>
    %cst_15 = arith.constant dense<0.000000e+00> : vector<8xf32>
    %19 = vector.multi_reduction <add>, %18, %cst_15 [1] : vector<8x512xf32> to vector<8xf32>
    %20 = vector.shape_cast %19 : vector<8xf32> to vector<8x1xf32>
    %21 = arith.addf %17, %20 : vector<8x1xf32>
    %c0_16 = arith.constant 0 : index
    %c0_17 = arith.constant 0 : index
    %22 = vector.load %arg7[%c0_16, %c0_17] : memref<8x1xf32, #tpu.memory_space<vmem>>, vector<8x1xf32>
    tpu.vector_store %arg7[%c0_16, %c0_17], %21 {strides = array<i32>} : memref<8x1xf32, #tpu.memory_space<vmem>>, vector<8x1xf32>,
    %c0_i32_18 = arith.constant 0 : i32
    %23 = arith.cmpi eq, %arg1, %c0_i32_18 : i32
    %24 = arith.extui %23 : i1 to i32
    %c0_i32_19 = arith.constant 0 : i32
    %25 = arith.cmpi ne, %24, %c0_i32_19 : i32
    scf.if %25 {
      %c0_20 = arith.constant 0 : index
      %c0_21 = arith.constant 0 : index
      %26 = vector.load %arg6[%c0_20, %c0_21] : memref<8x1xf32, #tpu.memory_space<vmem>>, vector<8x1xf32>
      %27 = math.sqrt %26 : vector<8x1xf32>
      %c0_22 = arith.constant 0 : index
      %c0_23 = arith.constant 0 : index
      %28 = vector.load %arg7[%c0_22, %c0_23] : memref<8x1xf32, #tpu.memory_space<vmem>>, vector<8x1xf32>
      %29 = math.sqrt %28 : vector<8x1xf32>
      %30 = arith.mulf %27, %29 : vector<8x1xf32>
      %cst_24 = arith.constant 9.99999993E-9 : f32
      %31 = vector.broadcast %cst_24 : f32 to vector<8x1xf32>
      %32 = arith.maximumf %30, %31 : vector<8x1xf32>
      %c0_25 = arith.constant 0 : index
      %c0_26 = arith.constant 0 : index
      %33 = vector.load %arg5[%c0_25, %c0_26] : memref<8x1xf32, #tpu.memory_space<vmem>>, vector<8x1xf32>
      %34 = arith.divf %33, %32 : vector<8x1xf32>
      %cst_27 = arith.constant 1.000000e+00 : f32
      %35 = vector.broadcast %cst_27 : f32 to vector<8x1xf32>
      %36 = arith.subf %35, %34 : vector<8x1xf32>
      %c0_28 = arith.constant 0 : index
      %c0_29 = arith.constant 0 : index
      %37 = vector.load %arg4[%c0_28, %c0_29] : memref<8x1xf32, #tpu.memory_space<vmem>>, vector<8x1xf32>
      tpu.vector_store %arg4[%c0_28, %c0_29], %36 {strides = array<i32>} : memref<8x1xf32, #tpu.memory_space<vmem>>, vector<8x1xf32>,
    } else {
    }
    return
  }
  func.func @transform_0(%arg0: i32, %arg1: i32) -> (i32, i32) {
    %c0_i32 = arith.constant 0 : i32
    return %arg0, %arg1 : i32, i32
  }
  func.func @transform_1(%arg0: i32, %arg1: i32) -> (i32, i32) {
    %c0_i32 = arith.constant 0 : i32
    return %arg0, %arg1 : i32, i32
  }
  func.func @transform_2(%arg0: i32, %arg1: i32) -> (i32, i32) {
    %c0_i32 = arith.constant 0 : i32
    %c0_i32_0 = arith.constant 0 : i32
    return %arg0, %c0_i32 : i32, i32
  }
}

</mosaic_0001>

<llo_original>
// kernel: tpu_custom_call.1
$region0: #{tpu_custom_call.1}
  #allocation0 [shape = 'u32[]', space=smem, size = 0x4, offset = 0x4, fixed_abs, tag = 'smem constant byte address 0x4 - core index']
  #allocation1 [shape = 'u32[72,128]{1,0:T(1,128)}', space=vmem, size = 0x9000, scoped, tag = 'internal scratch']
  #allocation2 [shape = 'f32[8,1]{1,0:T(8,128)}', space=vmem, size = 0x1000, scoped, tag = 'scratch operand']
  #allocation3 [shape = 'f32[8,1]{1,0:T(8,128)}', space=vmem, size = 0x1000, scoped, tag = 'scratch operand']
  #allocation4 [shape = 'f32[8,1]{1,0:T(8,128)}', space=vmem, size = 0x1000, scoped, tag = 'scratch operand']
  %s0 = inlined_call_operand.hbm [shape: f32[8,512], index: 0, kind: input, shape index: {}]
  %s1 = inlined_call_operand.hbm [shape: f32[8,512], index: 1, kind: input, shape index: {}]
  %s2 = inlined_call_operand.vmem [shape: f32[8,1], index: 2, kind: output, shape index: {}]
  %s3 = sld [smem:[#allocation0]]
  $region34: #{tpu_custom_call.1} parent=0
    _
  %s5 = ssub.s32 1, %s3
  %s6 = scalar_select 0, %s5, %s3
  $region1: #{tpu_custom_call.1} parent=0
    #allocation5 [shape = 'u8[16384]{0}', space=vmem, size = 0x4000, scoped, tag = 'input window, operand 0, single buffered']
    #allocation6 [shape = 's32[1]{0}', space=sflag, size = 0x4, scoped, tag = 'scoped memory for tpu_custom_call.1']
    #allocation7 [shape = 'u8[16384]{0}', space=vmem, size = 0x4000, scoped, tag = 'input window, operand 1, single buffered']
    #allocation8 [shape = 's32[1]{0}', space=sflag, size = 0x4, scoped, tag = 'scoped memory for tpu_custom_call.1']
    %7 = vsyncpa [#allocation6], 0
    %8 = vsyncpa [#allocation8], 0
    // Predicated region
    $region2: #{tpu_custom_call.1} parent=1 // pred_check
      _
    $region3: #{tpu_custom_call.1} parent=1 // pred_check_branch
      %10 = sbr.rel (0) target = $region5
    $region4: #{tpu_custom_call.1} parent=1 // pred_region
      %12 = vsyncadd [#allocation6], 0
      %s14 = sshll.u32 %s0, 4
      %s15 = int_to_ptr.hbm [resolvable:$true] %s14
      %s16 = sshll.u32 [#allocation5], 4
      %s17 = int_to_ptr.vmem [resolvable:$true] %s16
      %19 = dma.hbm_to_vmem [thread:$0]  %s15, 512, %s17, [#allocation6]
    $region5: #{tpu_custom_call.1} parent=1 // pred_fallthru
      _
    // Predicated region
    $region6: #{tpu_custom_call.1} parent=1 // pred_check
      _
    $region7: #{tpu_custom_call.1} parent=1 // pred_check_branch
      %21 = sbr.rel (0) target = $region9
    $region8: #{tpu_custom_call.1} parent=1 // pred_region
      %23 = vsyncadd [#allocation8], 0
      %s25 = sshll.u32 %s1, 4
      %s26 = int_to_ptr.hbm [resolvable:$true] %s25
      %s27 = sshll.u32 [#allocation7], 4
      %s28 = int_to_ptr.vmem [resolvable:$true] %s27
      %30 = dma.hbm_to_vmem [thread:$0]  %s26, 512, %s28, [#allocation8]
    $region9: #{tpu_custom_call.1} parent=1 // pred_fallthru
      _
    // Predicated region
    $region10: #{tpu_custom_call.1} parent=1 // pred_check
      _
    $region11: #{tpu_custom_call.1} parent=1 // pred_check_branch
      %32 = sbr.rel (0) target = $region13
    $region12: #{tpu_custom_call.1} parent=1 // pred_region
      %34 = dma.done [#allocation6], 512
    $region13: #{tpu_custom_call.1} parent=1 // pred_fallthru
      _
    // Predicated region
    $region14: #{tpu_custom_call.1} parent=1 // pred_check
      _
    $region15: #{tpu_custom_call.1} parent=1 // pred_check_branch
      %36 = sbr.rel (0) target = $region17
    $region16: #{tpu_custom_call.1} parent=1 // pred_region
      %38 = dma.done [#allocation8], 512
    $region17: #{tpu_custom_call.1} parent=1 // pred_fallthru
      _
    %p39 = scmp.eq.s32.totalorder 0, 0
    // Predicated region
    $region18: #{tpu_custom_call.1} parent=1 // pred_check
      %p40 = pneg %p39
    $region19: #{tpu_custom_call.1} parent=1 // pred_check_branch
      %42 = sbr.rel (%p40) target = $region21
    $region20: #{tpu_custom_call.1} parent=1 // pred_region
      %vm43 = vcmask 7168
      %44 = vst.msk [vmem:[#allocation2] sm:$0xff] %vm43, 0.0
      %45 = vst.msk [vmem:[#allocation3] sm:$0xff] %vm43, 0.0
      %46 = vst.msk [vmem:[#allocation4] sm:$0xff] %vm43, 0.0
    $region21: #{tpu_custom_call.1} parent=1 // pred_fallthru
      _
    %v47 = vld [vmem:[#allocation5] sm:$0xff]
    %v48 = vld [vmem:[#allocation5 + $0x8] sm:$0xff]
    %v49 = vld [vmem:[#allocation5 + $0x10] sm:$0xff]
    %v50 = vld [vmem:[#allocation5 + $0x18] sm:$0xff]
    %v51 = vld [vmem:[#allocation7] sm:$0xff]
    %v52 = vld [vmem:[#allocation7 + $0x8] sm:$0xff]
    %v53 = vld [vmem:[#allocation7 + $0x10] sm:$0xff]
    %v54 = vld [vmem:[#allocation7 + $0x18] sm:$0xff]
    %v55 = vld [vmem:[#allocation2] sm:$0xff]
    %v56 = vmul.f32 %v47, %v51
    %v57 = vmul.f32 %v48, %v52
    %v58 = vmul.f32 %v49, %v53
    %v59 = vmul.f32 %v50, %v54
    %v60 = vadd.f32 %v56, %v57
    %v61 = vadd.f32 %v60, %v58
    %v62 = vadd.f32 %v61, %v59
    %63 = vadd.xlane.f32.xlu0 %v62
    %v64 = vpop.xlane.xlu0 %63
    %v65 = vadd.f32 %v55, %v64
    %vm66 = vcmask 7168
    %67 = vst.msk [vmem:[#allocation2] sm:$0xff] %vm66, %v65
    %v68 = vld [vmem:[#allocation3] sm:$0xff]
    %v69 = vmul.f32 %v47, %v47
    %v70 = vmul.f32 %v48, %v48
    %v71 = vmul.f32 %v49, %v49
    %v72 = vmul.f32 %v50, %v50
    %v73 = vadd.f32 %v69, %v70
    %v74 = vadd.f32 %v73, %v71
    %v75 = vadd.f32 %v74, %v72
    %76 = vadd.xlane.f32.xlu0 %v75
    %v77 = vpop.xlane.xlu0 %76
    %v78 = vadd.f32 %v68, %v77
    %79 = vst.msk [vmem:[#allocation3] sm:$0xff] %vm66, %v78
    %v80 = vld [vmem:[#allocation4] sm:$0xff]
    %v81 = vmul.f32 %v51, %v51
    %v82 = vmul.f32 %v52, %v52
    %v83 = vmul.f32 %v53, %v53
    %v84 = vmul.f32 %v54, %v54
    %v85 = vadd.f32 %v81, %v82
    %v86 = vadd.f32 %v85, %v83
    %v87 = vadd.f32 %v86, %v84
    %88 = vadd.xlane.f32.xlu0 %v87
    %v89 = vpop.xlane.xlu0 %88
    %v90 = vadd.f32 %v80, %v89
    %91 = vst.msk [vmem:[#allocation4] sm:$0xff] %vm66, %v90
    // Predicated region
    $region22: #{tpu_custom_call.1} parent=1 // pred_check
      %p92 = pneg %p39
    $region23: #{tpu_custom_call.1} parent=1 // pred_check_branch
      %94 = sbr.rel (%p92) target = $region25
    $region24: #{tpu_custom_call.1} parent=1 // pred_region
      %v95 = vld [vmem:[#allocation3] sm:$0xff]
      %v96 = vrsqrt.pop %v95
      %v97 = vmul.f32 %v96, %v95
      %v98 = vmul.f32 %v97, %v96
      %v99 = vmul.f32 0.5, %v98
      %v100 = vsub.f32 1.5, %v99
      %v101 = vmul.f32 %v96, %v100
      %v102 = vmul.f32 %v95, %v101
      %vm103 = vcmp.eq.f32.partialorder %v95, inf
      %v104 = vsel %vm103, %v95, %v102
      %vm105 = vcmp.eq.f32.partialorder %v95, 0.0
      %v106 = vand.u32 %v95, 2147483648
      %v107 = vsel %vm105, %v106, %v104
      %v108 = vld [vmem:[#allocation4] sm:$0xff]
      %v109 = vrsqrt.pop %v108
      %v110 = vmul.f32 %v109, %v108
      %v111 = vmul.f32 %v110, %v109
      %v112 = vmul.f32 0.5, %v111
      %v113 = vsub.f32 1.5, %v112
      %v114 = vmul.f32 %v109, %v113
      %v115 = vmul.f32 %v108, %v114
      %vm116 = vcmp.eq.f32.partialorder %v108, inf
      %v117 = vsel %vm116, %v108, %v115
      %vm118 = vcmp.eq.f32.partialorder %v108, 0.0
      %v119 = vand.u32 %v108, 2147483648
      %v120 = vsel %vm118, %v119, %v117
      %v121 = vmul.f32 %v107, %v120
      %v122 = vmax.f32 %v121, 1e-08
      %v123 = vld [vmem:[#allocation2] sm:$0xff]
      %v124 = vrcp.pop %v122
      %v125 = vmul.f32 %v122, %v124
      %v126 = vsub.f32 1.0, %v125
      %v127 = vmul.f32 %v124, %v126
      %v128 = vadd.f32 %v124, %v127
      %vm129 = vweird.f32 %v122
      %vm130 = vweird.f32 %v124
      %vm131 = vmor %vm129, %vm130
      %v132 = vsel %vm131, %v124, %v128
      %v133 = vand.u32 2147483647, %v122
      %vm134 = vcmp.eq.f32.partialorder %v133, 8.507059e+37
      %v135 = vand.u32 %v122, 2147483648
      %v136 = vor.u32 1.1754944e-38, %v135
      %v137 = vsel %vm134, %v136, %v132
      %v138 = vmul.f32 %v123, %v137
      %v139 = vsub.f32 1.0, %v138
      %140 = vst.msk [vmem:[%s2] sm:$0xff] %vm66, %v139
    $region25: #{tpu_custom_call.1} parent=1 // pred_fallthru
      _
    // Predicated region
    $region26: #{tpu_custom_call.1} parent=1 // pred_check
      _
    $region27: #{tpu_custom_call.1} parent=1 // pred_check_branch
      %142 = sbr.rel (0) target = $region29
    $region28: #{tpu_custom_call.1} parent=1 // pred_region
      _
    $region29: #{tpu_custom_call.1} parent=1 // pred_fallthru
      _
    // Predicated region
    $region30: #{tpu_custom_call.1} parent=1 // pred_check
      _
    $region31: #{tpu_custom_call.1} parent=1 // pred_check_branch
      %144 = sbr.rel (0) target = $region33
    $region32: #{tpu_custom_call.1} parent=1 // pred_region
      _
    $region33: #{tpu_custom_call.1} parent=1 // pred_fallthru
      _
    %145 = vsyncpa [#allocation6], 1
    %146 = vsyncpa [#allocation8], 1

</llo_original>
